<compile_context>
chip_gen: v7x
topology: tpu7x:2x2x1
jax: 0.10.0
libtpu: 0.0.40
codegen_flags: <defaults>
</compile_context>

<pallas_src>
import functools

import jax
import jax.numpy as jnp
import numpy as np
from jax.experimental import pallas as pl
from jax.experimental.pallas import tpu as pltpu

LANE = 128     # lane width (last dim)
SUBLANE = 8    # f32 sublane width (second-to-last dim)


def _round_up(x, m):
    return (x + m - 1) // m * m


# ----------------------------------------------------------------------------
# Fused Pallas kernel: whole VAE forward for one batch tile
# ----------------------------------------------------------------------------
def _vae_fused_kernel(n_enc, n_dec, latent_pad, *refs):
    """refs = [x, (w,b)*n_enc, w_mu_logvar, b_mu_logvar, eps, (w,b)*n_dec,
               x_reconst_out, mu_out, logvar_out]."""
    idx = 0
    x_ref = refs[idx]; idx += 1
    enc = []
    for _ in range(n_enc):
        enc.append((refs[idx], refs[idx + 1])); idx += 2
    wmv_ref = refs[idx]; bmv_ref = refs[idx + 1]; idx += 2
    eps_ref = refs[idx]; idx += 1
    dec = []
    for _ in range(n_dec):
        dec.append((refs[idx], refs[idx + 1])); idx += 2
    xr_ref, mu_ref, logvar_ref = refs[idx], refs[idx + 1], refs[idx + 2]

    # ---- encoder: dropout(p=0.01) is identity in eval mode, then ReLU ----
    hid = x_ref[...]
    for w_ref, b_ref in enc:
        h = jnp.dot(hid, w_ref[...], preferred_element_type=jnp.float32) + b_ref[...]
        hid = jnp.maximum(h, 0.0)

    # ---- fused fc_mu / fc_logvar: one MXU pass, lane-dense (2*latent_p) output ----
    mv = jnp.dot(hid, wmv_ref[...], preferred_element_type=jnp.float32) + bmv_ref[...]
    mu = mv[:, :latent_pad]           # 128-aligned static slices -> no cross-lane moves
    logvar = mv[:, latent_pad:]
    mu_ref[...] = mu.astype(mu_ref.dtype)
    logvar_ref[...] = logvar.astype(logvar_ref.dtype)

    # ---- reparameterize: z = mu + eps * exp(logvar / 2) ----
    z = mu + eps_ref[...] * jnp.exp(logvar * 0.5)

    # ---- decoder: ReLU on all but the last layer ----
    hid = z
    for i, (w_ref, b_ref) in enumerate(dec):
        h = jnp.dot(hid, w_ref[...], preferred_element_type=jnp.float32) + b_ref[...]
        if i < n_dec - 1:
            h = jnp.maximum(h, 0.0)
        hid = h
    xr_ref[...] = hid.astype(xr_ref.dtype)


# ----------------------------------------------------------------------------
# Parameter init (PyTorch-like) + one-time 128-lane zero padding
# ----------------------------------------------------------------------------
def init_linear(key, din, dout, dtype=jnp.float32):
    kw, kb = jax.random.split(key)
    bound = 1.0 / float(np.sqrt(din))
    w = jax.random.uniform(kw, (din, dout), dtype, -bound, bound)
    b = jax.random.uniform(kb, (dout,), dtype, -bound, bound)
    return w, b


def init_vae_params(key, encode_dims, decode_dims, dtype=jnp.float32):
    params = {"encoder": [], "decoder": []}
    for i in range(len(encode_dims) - 2):
        key, sub = jax.random.split(key)
        params["encoder"].append(init_linear(sub, encode_dims[i], encode_dims[i + 1], dtype))
    key, sub = jax.random.split(key)
    params["fc_mu"] = init_linear(sub, encode_dims[-2], encode_dims[-1], dtype)
    key, sub = jax.random.split(key)
    params["fc_logvar"] = init_linear(sub, encode_dims[-2], encode_dims[-1], dtype)
    if decode_dims is not None:
        for i in range(len(decode_dims) - 1):
            key, sub = jax.random.split(key)
            params["decoder"].append(init_linear(sub, decode_dims[i], decode_dims[i + 1], dtype))
    return params


def pad_vae_params(params, encode_dims, decode_dims):
    """Zero-pad every feature dim up to a multiple of 128 lanes (done once)."""
    def padw(w):
        return jnp.pad(w, ((0, _round_up(w.shape[0], LANE) - w.shape[0]),
                           (0, _round_up(w.shape[1], LANE) - w.shape[1])))

    def padb(b):
        dp = _round_up(b.shape[0], LANE)
        return jnp.pad(b, (0, dp - b.shape[0])).reshape(1, dp)

    pp = {"encoder": [], "decoder": []}
    for w, b in params["encoder"]:
        pp["encoder"].append((padw(w), padb(b)))
    # fuse fc_mu / fc_logvar into one [hidden_p, 2*latent_p] projection
    w_mu, b_mu = params["fc_mu"]
    w_lv, b_lv = params["fc_logvar"]
    pp["w_mu_logvar"] = jnp.concatenate([padw(w_mu), padw(w_lv)], axis=1)
    pp["b_mu_logvar"] = jnp.concatenate([padb(b_mu), padb(b_lv)], axis=1)
    for w, b in params["decoder"]:
        pp["decoder"].append((padw(w), padb(b)))
    pp["meta"] = dict(
        d_in=encode_dims[0], d_latent=encode_dims[-1], d_out=decode_dims[-1],
        d_in_p=_round_up(encode_dims[0], LANE),
        d_latent_p=_round_up(encode_dims[-1], LANE),
        d_out_p=_round_up(decode_dims[-1], LANE),
    )
    return pp


# ----------------------------------------------------------------------------
# Forward wrapper: single pallas_call, batch-tiled grid
# ----------------------------------------------------------------------------
def vae_forward(pp, x, noise_key):
    meta = pp["meta"]
    d_in, d_latent, d_out = meta["d_in"], meta["d_latent"], meta["d_out"]
    d_in_p, d_latent_p, d_out_p = meta["d_in_p"], meta["d_latent_p"], meta["d_out_p"]
    n_enc, n_dec = len(pp["encoder"]), len(pp["decoder"])

    B = x.shape[0]
    dtype = x.dtype

    # eps drawn at the logical latent shape (matches un-padded semantics).
    eps = jax.random.normal(noise_key, (B, d_latent), dtype)

    # Batch tiling: whole batch in one block when small; 256-row "parallel"
    # tiles (double-buffered, megacore-shardable) when large.
    B_pad = _round_up(B, SUBLANE)
    if B_pad <= 256:
        tb = B_pad
    else:
        tb = 256
        B_pad = _round_up(B_pad, tb)
    grid = (B_pad // tb,)

    def pad2(a, rows, cols):
        return jnp.pad(a, ((0, rows - a.shape[0]), (0, cols - a.shape[1])))

    x_p = pad2(x, B_pad, d_in_p)
    eps_p = pad2(eps, B_pad, d_latent_p)

    def batch_spec(cols):
        return pl.BlockSpec((tb, cols), lambda i: (i, 0))

    def full_spec(arr):
        zeros = (0,) * arr.ndim
        return pl.BlockSpec(arr.shape, lambda i: zeros)   # resident across grid

    operands = [x_p]
    in_specs = [batch_spec(d_in_p)]
    for w, b in pp["encoder"]:
        operands += [w, b]
        in_specs += [full_spec(w), full_spec(b)]
    operands += [pp["w_mu_logvar"], pp["b_mu_logvar"], eps_p]
    in_specs += [full_spec(pp["w_mu_logvar"]), full_spec(pp["b_mu_logvar"]),
                 batch_spec(d_latent_p)]
    for w, b in pp["decoder"]:
        operands += [w, b]
        in_specs += [full_spec(w), full_spec(b)]

    out_shape = (
        jax.ShapeDtypeStruct((B_pad, d_out_p), dtype),      # x_reconst
        jax.ShapeDtypeStruct((B_pad, d_latent_p), dtype),   # mu
        jax.ShapeDtypeStruct((B_pad, d_latent_p), dtype),   # logvar
    )
    out_specs = (
        batch_spec(d_out_p),
        batch_spec(d_latent_p),
        batch_spec(d_latent_p),
    )

    kernel = functools.partial(_vae_fused_kernel, n_enc, n_dec, d_latent_p)
    xr_p, mu_p, logvar_p = pl.pallas_call(
        kernel,
        out_shape=out_shape,
        grid=grid,
        in_specs=in_specs,
        out_specs=out_specs,
        compiler_params=pltpu.CompilerParams(
            dimension_semantics=("parallel",),
        ),
    )(*operands)

    return xr_p[:B, :d_out], mu_p[:B, :d_latent], logvar_p[:B, :d_latent]


# ----------------------------------------------------------------------------
# Pure-JAX reference (unpadded) for correctness checking
# ----------------------------------------------------------------------------
def vae_forward_ref(params, x, eps):
    hid = x
    for w, b in params["encoder"]:
        hid = jnp.maximum(hid @ w + b, 0.0)
    mu = hid @ params["fc_mu"][0] + params["fc_mu"][1]
    logvar = hid @ params["fc_logvar"][0] + params["fc_logvar"][1]
    z = mu + eps * jnp.exp(logvar * 0.5)
    hid = z
    n = len(params["decoder"])
    for i, (w, b) in enumerate(params["decoder"]):
        hid = hid @ w + b
        if i < n - 1:
            hid = jnp.maximum(hid, 0.0)
    return hid, mu, logvar


# ----------------------------------------------------------------------------
# Main
# ----------------------------------------------------------------------------
if __name__ == "__main__":
    encode_dims = [32, 64, 16]   # input -> hidden -> latent
    decode_dims = [16, 64, 32]   # latent -> hidden -> reconstruction
    batch = 8

    root = jax.random.PRNGKey(0)
    k_params, k_x, k_noise = jax.random.split(root, 3)

    params = init_vae_params(k_params, encode_dims, decode_dims)
    pp = pad_vae_params(params, encode_dims, decode_dims)
    x = jax.random.normal(k_x, (batch, encode_dims[0]), jnp.float32)

    x_reconst, mu, logvar = vae_forward(pp, x, k_noise)
    jax.block_until_ready((x_reconst, mu, logvar))

    assert x_reconst.shape == (batch, decode_dims[-1])
    assert mu.shape == (batch, encode_dims[-1])
    assert logvar.shape == (batch, encode_dims[-1])

    # numerical check against the pure-JAX reference (same eps stream)
    eps = jax.random.normal(k_noise, (batch, encode_dims[-1]), jnp.float32)
    xr_r, mu_r, lv_r = vae_forward_ref(params, x, eps)
    assert np.allclose(np.asarray(x_reconst), np.asarray(xr_r), atol=1e-3, rtol=1e-3)
    assert np.allclose(np.asarray(mu), np.asarray(mu_r), atol=1e-3, rtol=1e-3)
    assert np.allclose(np.asarray(logvar), np.asarray(lv_r), atol=1e-3, rtol=1e-3)

    print("KERNEL_OK")
</pallas_src>

<mosaic_0001>
module attributes {stable_mosaic.version = 11 : i64} {
  func.func @_vae_fused_kernel(%arg0: i32, %arg1: memref<8x128xf32, #tpu.memory_space<vmem>>, %arg2: memref<128x128xf32, #tpu.memory_space<vmem>>, %arg3: memref<1x128xf32, #tpu.memory_space<vmem>>, %arg4: memref<128x256xf32, #tpu.memory_space<vmem>>, %arg5: memref<1x256xf32, #tpu.memory_space<vmem>>, %arg6: memref<8x128xf32, #tpu.memory_space<vmem>>, %arg7: memref<128x128xf32, #tpu.memory_space<vmem>>, %arg8: memref<1x128xf32, #tpu.memory_space<vmem>>, %arg9: memref<128x128xf32, #tpu.memory_space<vmem>>, %arg10: memref<1x128xf32, #tpu.memory_space<vmem>>, %arg11: memref<8x128xf32, #tpu.memory_space<vmem>>, %arg12: memref<8x128xf32, #tpu.memory_space<vmem>>, %arg13: memref<8x128xf32, #tpu.memory_space<vmem>>) attributes {dimension_semantics = [#tpu.dimension_semantics<parallel>], iteration_bounds = array<i64: 1>, scalar_prefetch = 0 : i64, scratch_operands = 0 : i64, tpu.core_type = #tpu.core_type<tc>, window_params = [{transform_indices = @transform_0, window_bounds = array<i64: 8, 128>}, {pipeline_mode = #tpu.pipeline_mode<synchronous>, transform_indices = @transform_1, window_bounds = array<i64: 128, 128>}, {pipeline_mode = #tpu.pipeline_mode<synchronous>, transform_indices = @transform_2, window_bounds = array<i64: 1, 128>}, {pipeline_mode = #tpu.pipeline_mode<synchronous>, transform_indices = @transform_3, window_bounds = array<i64: 128, 256>}, {pipeline_mode = #tpu.pipeline_mode<synchronous>, transform_indices = @transform_4, window_bounds = array<i64: 1, 256>}, {transform_indices = @transform_5, window_bounds = array<i64: 8, 128>}, {pipeline_mode = #tpu.pipeline_mode<synchronous>, transform_indices = @transform_6, window_bounds = array<i64: 128, 128>}, {pipeline_mode = #tpu.pipeline_mode<synchronous>, transform_indices = @transform_7, window_bounds = array<i64: 1, 128>}, {pipeline_mode = #tpu.pipeline_mode<synchronous>, transform_indices = @transform_8, window_bounds = array<i64: 128, 128>}, {pipeline_mode = #tpu.pipeline_mode<synchronous>, transform_indices = @transform_9, window_bounds = array<i64: 1, 128>}, {transform_indices = @transform_10, window_bounds = array<i64: 8, 128>}, {transform_indices = @transform_11, window_bounds = array<i64: 8, 128>}, {transform_indices = @transform_12, window_bounds = array<i64: 8, 128>}]} {
    %c0 = arith.constant 0 : index
    %c0_0 = arith.constant 0 : index
    %0 = vector.load %arg1[%c0, %c0_0] : memref<8x128xf32, #tpu.memory_space<vmem>>, vector<8x128xf32>
    %c0_1 = arith.constant 0 : index
    %c0_2 = arith.constant 0 : index
    %1 = vector.load %arg2[%c0_1, %c0_2] : memref<128x128xf32, #tpu.memory_space<vmem>>, vector<128x128xf32>
    %cst = arith.constant dense<0.000000e+00> : vector<8x128xf32>
    %2 = tpu.matmul %0, %1, %cst {dimension_numbers = #tpu.dot_dimension_numbers<[1], [0], [0], [1], [0, 0, 1, 1], [], []>} : vector<8x128xf32>, vector<128x128xf32>, vector<8x128xf32> -> vector<8x128xf32>
    %c0_3 = arith.constant 0 : index
    %c0_4 = arith.constant 0 : index
    %3 = vector.load %arg3[%c0_3, %c0_4] : memref<1x128xf32, #tpu.memory_space<vmem>>, vector<1x128xf32>
    %4 = vector.broadcast %3 : vector<1x128xf32> to vector<8x128xf32>
    %5 = arith.addf %2, %4 : vector<8x128xf32>
    %cst_5 = arith.constant 0.000000e+00 : f32
    %6 = vector.broadcast %cst_5 : f32 to vector<8x128xf32>
    %7 = arith.maximumf %5, %6 : vector<8x128xf32>
    %c0_6 = arith.constant 0 : index
    %c0_7 = arith.constant 0 : index
    %8 = vector.load %arg4[%c0_6, %c0_7] : memref<128x256xf32, #tpu.memory_space<vmem>>, vector<128x256xf32>
    %cst_8 = arith.constant dense<0.000000e+00> : vector<8x256xf32>
    %9 = tpu.matmul %7, %8, %cst_8 {dimension_numbers = #tpu.dot_dimension_numbers<[1], [0], [0], [1], [0, 0, 1, 1], [], []>} : vector<8x128xf32>, vector<128x256xf32>, vector<8x256xf32> -> vector<8x256xf32>
    %c0_9 = arith.constant 0 : index
    %c0_10 = arith.constant 0 : index
    %10 = vector.load %arg5[%c0_9, %c0_10] : memref<1x256xf32, #tpu.memory_space<vmem>>, vector<1x256xf32>
    %11 = vector.broadcast %10 : vector<1x256xf32> to vector<8x256xf32>
    %12 = arith.addf %9, %11 : vector<8x256xf32>
    %13 = vector.extract_strided_slice %12 {offsets = [0, 0], sizes = [8, 128], strides = [1, 1]} : vector<8x256xf32> to vector<8x128xf32>
    %14 = vector.extract_strided_slice %12 {offsets = [0, 128], sizes = [8, 128], strides = [1, 1]} : vector<8x256xf32> to vector<8x128xf32>
    %c0_11 = arith.constant 0 : index
    %c0_12 = arith.constant 0 : index
    %15 = vector.load %arg12[%c0_11, %c0_12] : memref<8x128xf32, #tpu.memory_space<vmem>>, vector<8x128xf32>
    tpu.vector_store %arg12[%c0_11, %c0_12], %13 {strides = array<i32>} : memref<8x128xf32, #tpu.memory_space<vmem>>, vector<8x128xf32>,
    %c0_13 = arith.constant 0 : index
    %c0_14 = arith.constant 0 : index
    %16 = vector.load %arg13[%c0_13, %c0_14] : memref<8x128xf32, #tpu.memory_space<vmem>>, vector<8x128xf32>
    tpu.vector_store %arg13[%c0_13, %c0_14], %14 {strides = array<i32>} : memref<8x128xf32, #tpu.memory_space<vmem>>, vector<8x128xf32>,
    %c0_15 = arith.constant 0 : index
    %c0_16 = arith.constant 0 : index
    %17 = vector.load %arg6[%c0_15, %c0_16] : memref<8x128xf32, #tpu.memory_space<vmem>>, vector<8x128xf32>
    %cst_17 = arith.constant 5.000000e-01 : f32
    %18 = vector.broadcast %cst_17 : f32 to vector<8x128xf32>
    %19 = arith.mulf %14, %18 : vector<8x128xf32>
    %20 = math.exp %19 : vector<8x128xf32>
    %21 = arith.mulf %17, %20 : vector<8x128xf32>
    %22 = arith.addf %13, %21 : vector<8x128xf32>
    %c0_18 = arith.constant 0 : index
    %c0_19 = arith.constant 0 : index
    %23 = vector.load %arg7[%c0_18, %c0_19] : memref<128x128xf32, #tpu.memory_space<vmem>>, vector<128x128xf32>
    %cst_20 = arith.constant dense<0.000000e+00> : vector<8x128xf32>
    %24 = tpu.matmul %22, %23, %cst_20 {dimension_numbers = #tpu.dot_dimension_numbers<[1], [0], [0], [1], [0, 0, 1, 1], [], []>} : vector<8x128xf32>, vector<128x128xf32>, vector<8x128xf32> -> vector<8x128xf32>
    %c0_21 = arith.constant 0 : index
    %c0_22 = arith.constant 0 : index
    %25 = vector.load %arg8[%c0_21, %c0_22] : memref<1x128xf32, #tpu.memory_space<vmem>>, vector<1x128xf32>
    %26 = vector.broadcast %25 : vector<1x128xf32> to vector<8x128xf32>
    %27 = arith.addf %24, %26 : vector<8x128xf32>
    %cst_23 = arith.constant 0.000000e+00 : f32
    %28 = vector.broadcast %cst_23 : f32 to vector<8x128xf32>
    %29 = arith.maximumf %27, %28 : vector<8x128xf32>
    %c0_24 = arith.constant 0 : index
    %c0_25 = arith.constant 0 : index
    %30 = vector.load %arg9[%c0_24, %c0_25] : memref<128x128xf32, #tpu.memory_space<vmem>>, vector<128x128xf32>
    %cst_26 = arith.constant dense<0.000000e+00> : vector<8x128xf32>
    %31 = tpu.matmul %29, %30, %cst_26 {dimension_numbers = #tpu.dot_dimension_numbers<[1], [0], [0], [1], [0, 0, 1, 1], [], []>} : vector<8x128xf32>, vector<128x128xf32>, vector<8x128xf32> -> vector<8x128xf32>
    %c0_27 = arith.constant 0 : index
    %c0_28 = arith.constant 0 : index
    %32 = vector.load %arg10[%c0_27, %c0_28] : memref<1x128xf32, #tpu.memory_space<vmem>>, vector<1x128xf32>
    %33 = vector.broadcast %32 : vector<1x128xf32> to vector<8x128xf32>
    %34 = arith.addf %31, %33 : vector<8x128xf32>
    %c0_29 = arith.constant 0 : index
    %c0_30 = arith.constant 0 : index
    %35 = vector.load %arg11[%c0_29, %c0_30] : memref<8x128xf32, #tpu.memory_space<vmem>>, vector<8x128xf32>
    tpu.vector_store %arg11[%c0_29, %c0_30], %34 {strides = array<i32>} : memref<8x128xf32, #tpu.memory_space<vmem>>, vector<8x128xf32>,
    return
  }
  func.func @transform_0(%arg0: i32) -> (i32, i32) {
    %c0_i32 = arith.constant 0 : i32
    %c0_i32_0 = arith.constant 0 : i32
    return %arg0, %c0_i32 : i32, i32
  }
  func.func @transform_1(%arg0: i32) -> (i32, i32) {
    %c0_i32 = arith.constant 0 : i32
    %c0_i32_0 = arith.constant 0 : i32
    %c0_i32_1 = arith.constant 0 : i32
    return %c0_i32, %c0_i32_0 : i32, i32
  }
  func.func @transform_2(%arg0: i32) -> (i32, i32) {
    %c0_i32 = arith.constant 0 : i32
    %c0_i32_0 = arith.constant 0 : i32
    %c0_i32_1 = arith.constant 0 : i32
    return %c0_i32, %c0_i32_0 : i32, i32
  }
  func.func @transform_3(%arg0: i32) -> (i32, i32) {
    %c0_i32 = arith.constant 0 : i32
    %c0_i32_0 = arith.constant 0 : i32
    %c0_i32_1 = arith.constant 0 : i32
    return %c0_i32, %c0_i32_0 : i32, i32
  }
  func.func @transform_4(%arg0: i32) -> (i32, i32) {
    %c0_i32 = arith.constant 0 : i32
    %c0_i32_0 = arith.constant 0 : i32
    %c0_i32_1 = arith.constant 0 : i32
    return %c0_i32, %c0_i32_0 : i32, i32
  }
  func.func @transform_5(%arg0: i32) -> (i32, i32) {
    %c0_i32 = arith.constant 0 : i32
    %c0_i32_0 = arith.constant 0 : i32
    return %arg0, %c0_i32 : i32, i32
  }
  func.func @transform_6(%arg0: i32) -> (i32, i32) {
    %c0_i32 = arith.constant 0 : i32
    %c0_i32_0 = arith.constant 0 : i32
    %c0_i32_1 = arith.constant 0 : i32
    return %c0_i32, %c0_i32_0 : i32, i32
  }
  func.func @transform_7(%arg0: i32) -> (i32, i32) {
    %c0_i32 = arith.constant 0 : i32
    %c0_i32_0 = arith.constant 0 : i32
    %c0_i32_1 = arith.constant 0 : i32
    return %c0_i32, %c0_i32_0 : i32, i32
  }
  func.func @transform_8(%arg0: i32) -> (i32, i32) {
    %c0_i32 = arith.constant 0 : i32
    %c0_i32_0 = arith.constant 0 : i32
    %c0_i32_1 = arith.constant 0 : i32
    return %c0_i32, %c0_i32_0 : i32, i32
  }
  func.func @transform_9(%arg0: i32) -> (i32, i32) {
    %c0_i32 = arith.constant 0 : i32
    %c0_i32_0 = arith.constant 0 : i32
    %c0_i32_1 = arith.constant 0 : i32
    return %c0_i32, %c0_i32_0 : i32, i32
  }
  func.func @transform_10(%arg0: i32) -> (i32, i32) {
    %c0_i32 = arith.constant 0 : i32
    %c0_i32_0 = arith.constant 0 : i32
    return %arg0, %c0_i32 : i32, i32
  }
  func.func @transform_11(%arg0: i32) -> (i32, i32) {
    %c0_i32 = arith.constant 0 : i32
    %c0_i32_0 = arith.constant 0 : i32
    return %arg0, %c0_i32 : i32, i32
  }
  func.func @transform_12(%arg0: i32) -> (i32, i32) {
    %c0_i32 = arith.constant 0 : i32
    %c0_i32_0 = arith.constant 0 : i32
    return %arg0, %c0_i32 : i32, i32
  }
}

</mosaic_0001>

<llo_original>
// kernel: tpu_custom_call.1
$region0: #{tpu_custom_call.1}
  #allocation0 [shape = 'u32[]', space=smem, size = 0x4, offset = 0x4, fixed_abs, tag = 'smem constant byte address 0x4 - core index']
  #allocation1 [shape = 'u32[144,128]{1,0:T(1,128)}', space=vmem, size = 0x12000, scoped, tag = 'internal scratch']
  %s0 = inlined_call_operand.hbm [shape: f32[8,128], index: 0, kind: input, shape index: {}]
  %s1 = inlined_call_operand.hbm [shape: f32[128,128], index: 1, kind: input, shape index: {}]
  %s2 = inlined_call_operand.vmem [shape: f32[1,128], index: 2, kind: input, shape index: {}]
  %s3 = inlined_call_operand.hbm [shape: f32[128,256], index: 3, kind: input, shape index: {}]
  %s4 = inlined_call_operand.vmem [shape: f32[1,256], index: 4, kind: input, shape index: {}]
  %s5 = inlined_call_operand.vmem [shape: f32[8,128], index: 5, kind: input, shape index: {}]
  %s6 = inlined_call_operand.hbm [shape: f32[128,128], index: 6, kind: input, shape index: {}]
  %s7 = inlined_call_operand.vmem [shape: f32[1,128], index: 7, kind: input, shape index: {}]
  %s8 = inlined_call_operand.hbm [shape: f32[128,128], index: 8, kind: input, shape index: {}]
  %s9 = inlined_call_operand.vmem [shape: f32[1,128], index: 9, kind: input, shape index: {}]
  %s10 = inlined_call_operand.hbm [shape: f32[8,128], index: 10, kind: output, shape index: {0}]
  %s11 = inlined_call_operand.hbm [shape: f32[8,128], index: 11, kind: output, shape index: {1}]
  %s12 = inlined_call_operand.hbm [shape: f32[8,128], index: 12, kind: output, shape index: {2}]
  %13 = xla_tuple %s10, %s11, %s12
  %s14 = sld [smem:[#allocation0]]
  $region86: #{tpu_custom_call.1} parent=0
    _
  %s16 = ssub.s32 1, %s14
  %s17 = scalar_select 0, %s16, %s14
  $region1: #{tpu_custom_call.1} parent=0
    #allocation2 [shape = 'u8[4096]{0}', space=vmem, size = 0x1000, scoped, tag = 'input window, operand 0, single buffered']
    #allocation3 [shape = 's32[1]{0}', space=sflag, size = 0x4, scoped, tag = 'scoped memory for tpu_custom_call.1']
    #allocation4 [shape = 's32[1]{0}', space=sflag, size = 0x4, scoped, tag = 'scoped memory for tpu_custom_call.1']
    #allocation5 [shape = 'u8[65536]{0}', space=vmem, size = 0x10000, scoped, tag = 'input window, operand 1, single buffered']
    #allocation6 [shape = 's32[1]{0}', space=sflag, size = 0x4, scoped, tag = 'scoped memory for tpu_custom_call.1']
    #allocation7 [shape = 'u8[131072]{0}', space=vmem, size = 0x20000, scoped, tag = 'input window, operand 3, single buffered']
    #allocation8 [shape = 'u8[65536]{0}', space=vmem, size = 0x10000, scoped, tag = 'input window, operand 6, single buffered']
    #allocation9 [shape = 's32[1]{0}', space=sflag, size = 0x4, scoped, tag = 'scoped memory for tpu_custom_call.1']
    #allocation10 [shape = 'u8[65536]{0}', space=vmem, size = 0x10000, scoped, tag = 'input window, operand 8, single buffered']
    #allocation11 [shape = 'u8[4096]{0}', space=vmem, size = 0x1000, scoped, tag = 'output window, operand 0, single buffered']
    #allocation12 [shape = 'u8[4096]{0}', space=vmem, size = 0x1000, scoped, tag = 'output window, operand 1, single buffered']
    #allocation13 [shape = 's32[1]{0}', space=sflag, size = 0x4, scoped, tag = 'scoped memory for tpu_custom_call.1']
    #allocation14 [shape = 'u8[4096]{0}', space=vmem, size = 0x1000, scoped, tag = 'output window, operand 2, single buffered']
    %18 = vsyncpa [#allocation3], 0
    %19 = vsyncpa [#allocation6], 0
    %20 = vsyncpa [#allocation9], 0
    %21 = vsyncpa [#allocation4], 0
    %22 = vsyncpa [#allocation13], 0
    // Predicated region
    $region2: #{tpu_custom_call.1} parent=1 // pred_check
      _
    $region3: #{tpu_custom_call.1} parent=1 // pred_check_branch
      %24 = sbr.rel (0) target = $region5
    $region4: #{tpu_custom_call.1} parent=1 // pred_region
      %s26 = ssub.s32 128, 128
      %27 = vsyncadd [#allocation3], %s26
      %s29 = sshll.u32 [#allocation2], 4
      %s30 = int_to_ptr.vmem [resolvable:$true] %s29
      %32 = dma.hbm_to_vmem [thread:$0]  %s0, 128, %s30, [#allocation3]
    $region5: #{tpu_custom_call.1} parent=1 // pred_fallthru
      _
    // Predicated region
    $region6: #{tpu_custom_call.1} parent=1 // pred_check
      _
    $region7: #{tpu_custom_call.1} parent=1 // pred_check_branch
      %34 = sbr.rel (0) target = $region9
    $region8: #{tpu_custom_call.1} parent=1 // pred_region
      %s36 = ssub.s32 2048, 2048
      %37 = vsyncadd [#allocation6], %s36
      %s38 = sshll.u32 [#allocation5], 4
      %s39 = int_to_ptr.vmem [resolvable:$true] %s38
      %44 = dma.hbm_to_vmem [thread:$0]  %s1, 2048, %s39, [#allocation6], 128, 128, 8
    $region9: #{tpu_custom_call.1} parent=1 // pred_fallthru
      _
    // Predicated region
    $region10: #{tpu_custom_call.1} parent=1 // pred_check
      _
    $region11: #{tpu_custom_call.1} parent=1 // pred_check_branch
      %46 = sbr.rel (0) target = $region13
    $region12: #{tpu_custom_call.1} parent=1 // pred_region
      _
    $region13: #{tpu_custom_call.1} parent=1 // pred_fallthru
      _
    // Predicated region
    $region14: #{tpu_custom_call.1} parent=1 // pred_check
      _
    $region15: #{tpu_custom_call.1} parent=1 // pred_check_branch
      %48 = sbr.rel (0) target = $region17
    $region16: #{tpu_custom_call.1} parent=1 // pred_region
      %s50 = ssub.s32 4096, 4096
      %51 = vsyncadd [#allocation6], %s50
      %s52 = sshll.u32 [#allocation7], 4
      %s53 = int_to_ptr.vmem [resolvable:$true] %s52
      %58 = dma.hbm_to_vmem [thread:$0]  %s3, 4096, %s53, [#allocation6], 256, 256, 16
    $region17: #{tpu_custom_call.1} parent=1 // pred_fallthru
      _
    // Predicated region
    $region18: #{tpu_custom_call.1} parent=1 // pred_check
      _
    $region19: #{tpu_custom_call.1} parent=1 // pred_check_branch
      %60 = sbr.rel (0) target = $region21
    $region20: #{tpu_custom_call.1} parent=1 // pred_region
      _
    $region21: #{tpu_custom_call.1} parent=1 // pred_fallthru
      _
    // Predicated region
    $region22: #{tpu_custom_call.1} parent=1 // pred_check
      _
    $region23: #{tpu_custom_call.1} parent=1 // pred_check_branch
      %62 = sbr.rel (0) target = $region25
    $region24: #{tpu_custom_call.1} parent=1 // pred_region
      _
    $region25: #{tpu_custom_call.1} parent=1 // pred_fallthru
      _
    // Predicated region
    $region26: #{tpu_custom_call.1} parent=1 // pred_check
      _
    $region27: #{tpu_custom_call.1} parent=1 // pred_check_branch
      %64 = sbr.rel (0) target = $region29
    $region28: #{tpu_custom_call.1} parent=1 // pred_region
      %s66 = ssub.s32 2048, 2048
      %67 = vsyncadd [#allocation9], %s66
      %s68 = sshll.u32 [#allocation8], 4
      %s69 = int_to_ptr.vmem [resolvable:$true] %s68
      %74 = dma.hbm_to_vmem [thread:$0]  %s6, 2048, %s69, [#allocation9], 128, 128, 8
    $region29: #{tpu_custom_call.1} parent=1 // pred_fallthru
      _
    // Predicated region
    $region30: #{tpu_custom_call.1} parent=1 // pred_check
      _
    $region31: #{tpu_custom_call.1} parent=1 // pred_check_branch
      %76 = sbr.rel (0) target = $region33
    $region32: #{tpu_custom_call.1} parent=1 // pred_region
      _
    $region33: #{tpu_custom_call.1} parent=1 // pred_fallthru
      _
    // Predicated region
    $region34: #{tpu_custom_call.1} parent=1 // pred_check
      _
    $region35: #{tpu_custom_call.1} parent=1 // pred_check_branch
      %78 = sbr.rel (0) target = $region37
    $region36: #{tpu_custom_call.1} parent=1 // pred_region
      %s80 = ssub.s32 2048, 2048
      %81 = vsyncadd [#allocation9], %s80
      %s82 = sshll.u32 [#allocation10], 4
      %s83 = int_to_ptr.vmem [resolvable:$true] %s82
      %88 = dma.hbm_to_vmem [thread:$0]  %s8, 2048, %s83, [#allocation9], 128, 128, 8
    $region37: #{tpu_custom_call.1} parent=1 // pred_fallthru
      _
    // Predicated region
    $region38: #{tpu_custom_call.1} parent=1 // pred_check
      _
    $region39: #{tpu_custom_call.1} parent=1 // pred_check_branch
      %90 = sbr.rel (0) target = $region41
    $region40: #{tpu_custom_call.1} parent=1 // pred_region
      _
    $region41: #{tpu_custom_call.1} parent=1 // pred_fallthru
      _
    // Predicated region
    $region42: #{tpu_custom_call.1} parent=1 // pred_check
      _
    $region43: #{tpu_custom_call.1} parent=1 // pred_check_branch
      %92 = sbr.rel (0) target = $region45
    $region44: #{tpu_custom_call.1} parent=1 // pred_region
      %93 = dma.done [#allocation3], 128
    $region45: #{tpu_custom_call.1} parent=1 // pred_fallthru
      _
    // Predicated region
    $region46: #{tpu_custom_call.1} parent=1 // pred_check
      _
    $region47: #{tpu_custom_call.1} parent=1 // pred_check_branch
      %95 = sbr.rel (0) target = $region49
    $region48: #{tpu_custom_call.1} parent=1 // pred_region
      %96 = dma.done [#allocation6], 2048
    $region49: #{tpu_custom_call.1} parent=1 // pred_fallthru
      _
    // Predicated region
    $region50: #{tpu_custom_call.1} parent=1 // pred_check
      _
    $region51: #{tpu_custom_call.1} parent=1 // pred_check_branch
      %98 = sbr.rel (0) target = $region53
    $region52: #{tpu_custom_call.1} parent=1 // pred_region
      %99 = dma.done [#allocation6], 4096
    $region53: #{tpu_custom_call.1} parent=1 // pred_fallthru
      _
    // Predicated region
    $region54: #{tpu_custom_call.1} parent=1 // pred_check
      _
    $region55: #{tpu_custom_call.1} parent=1 // pred_check_branch
      %101 = sbr.rel (0) target = $region57
    $region56: #{tpu_custom_call.1} parent=1 // pred_region
      %102 = dma.done [#allocation9], 2048
    $region57: #{tpu_custom_call.1} parent=1 // pred_fallthru
      _
    // Predicated region
    $region58: #{tpu_custom_call.1} parent=1 // pred_check
      _
    $region59: #{tpu_custom_call.1} parent=1 // pred_check_branch
      %104 = sbr.rel (0) target = $region61
    $region60: #{tpu_custom_call.1} parent=1 // pred_region
      %105 = dma.done [#allocation9], 2048
    $region61: #{tpu_custom_call.1} parent=1 // pred_fallthru
      _
    %v106 = vld [vmem:[#allocation2] sm:$0xff]
    %v107 = vld [vmem:[#allocation5] sm:$0xff]
    %v108 = vld [vmem:[#allocation5 + $0x8] sm:$0xff]
    %v109 = vld [vmem:[#allocation5 + $0x10] sm:$0xff]
    %v110 = vld [vmem:[#allocation5 + $0x18] sm:$0xff]
    %v111 = vld [vmem:[#allocation5 + $0x20] sm:$0xff]
    %v112 = vld [vmem:[#allocation5 + $0x28] sm:$0xff]
    %v113 = vld [vmem:[#allocation5 + $0x30] sm:$0xff]
    %v114 = vld [vmem:[#allocation5 + $0x38] sm:$0xff]
    %v115 = vld [vmem:[#allocation5 + $0x40] sm:$0xff]
    %v116 = vld [vmem:[#allocation5 + $0x48] sm:$0xff]
    %v117 = vld [vmem:[#allocation5 + $0x50] sm:$0xff]
    %v118 = vld [vmem:[#allocation5 + $0x58] sm:$0xff]
    %v119 = vld [vmem:[#allocation5 + $0x60] sm:$0xff]
    %v120 = vld [vmem:[#allocation5 + $0x68] sm:$0xff]
    %v121 = vld [vmem:[#allocation5 + $0x70] sm:$0xff]
    %v122 = vld [vmem:[#allocation5 + $0x78] sm:$0xff]
    %v123 = vld [vmem:[%s2] sm:$0x1]
    %v125 = vlaneseq
    %v126 = vshrl.u32 %v125, 7
    %v127 = vsub.s32 0, %v126
    %v128 = vrot.slane %v123, %v127
    %130 = vmatprep.subr.mxu0 0.0
    %131 = vmatpush1.msra.mxu0 %v107
    %132 = vmatprep.subr.mxu0 0.0
    %133 = vmatpush1.msra.mxu0 %v108
    %134 = vmatprep.subr.mxu0 0.0
    %135 = vmatpush1.msra.mxu0 %v109
    %136 = vmatprep.subr.mxu0 0.0
    %137 = vmatpush1.msra.mxu0 %v110
    %138 = vmatprep.subr.mxu0 0.0
    %139 = vmatpush1.msra.mxu0 %v111
    %140 = vmatprep.subr.mxu0 0.0
    %141 = vmatpush1.msra.mxu0 %v112
    %142 = vmatprep.subr.mxu0 0.0
    %143 = vmatpush1.msra.mxu0 %v113
    %144 = vmatprep.subr.mxu0 0.0
    %145 = vmatpush1.msra.mxu0 %v114
    %146 = vmatprep.subr.mxu0 0.0
    %147 = vmatpush1.msra.mxu0 %v115
    %148 = vmatprep.subr.mxu0 0.0
    %149 = vmatpush1.msra.mxu0 %v116
    %150 = vmatprep.subr.mxu0 0.0
    %151 = vmatpush1.msra.mxu0 %v117
    %152 = vmatprep.subr.mxu0 0.0
    %153 = vmatpush1.msra.mxu0 %v118
    %154 = vmatprep.subr.mxu0 0.0
    %155 = vmatpush1.msra.mxu0 %v119
    %156 = vmatprep.subr.mxu0 0.0
    %157 = vmatpush1.msra.mxu0 %v120
    %158 = vmatprep.subr.mxu0 0.0
    %159 = vmatpush1.msra.mxu0 %v121
    %160 = vmatprep.subr.mxu0 0.0
    %161 = vmatpush1.msra.mxu0 %v122
    %162 = vmatprep.subr.mxu0 0.0
    %163 = vmatpush1.msra.mxu0 0.0
    %164 = vmatprep.subr.mxu0 0.0
    %165 = vmatpush1.msra.mxu0 0.0
    %166 = vmatprep.subr.mxu0 0.0
    %167 = vmatpush1.msra.mxu0 0.0
    %168 = vmatprep.subr.mxu0 0.0
    %169 = vmatpush1.msra.mxu0 0.0
    %170 = vmatprep.subr.mxu0 0.0
    %171 = vmatpush1.msra.mxu0 0.0
    %172 = vmatprep.subr.mxu0 0.0
    %173 = vmatpush1.msra.mxu0 0.0
    %174 = vmatprep.subr.mxu0 0.0
    %175 = vmatpush1.msra.mxu0 0.0
    %176 = vmatprep.subr.mxu0 0.0
    %177 = vmatpush1.msra.mxu0 0.0
    %178 = vmatprep.subr.mxu0 0.0
    %179 = vmatpush1.msra.mxu0 0.0
    %180 = vmatprep.subr.mxu0 0.0
    %181 = vmatpush1.msra.mxu0 0.0
    %182 = vmatprep.subr.mxu0 0.0
    %183 = vmatpush1.msra.mxu0 0.0
    %184 = vmatprep.subr.mxu0 0.0
    %185 = vmatpush1.msra.mxu0 0.0
    %186 = vmatprep.subr.mxu0 0.0
    %187 = vmatpush1.msra.mxu0 0.0
    %188 = vmatprep.subr.mxu0 0.0
    %189 = vmatpush1.msra.mxu0 0.0
    %190 = vmatprep.subr.mxu0 0.0
    %191 = vmatpush1.msra.mxu0 0.0
    %192 = vmatprep.subr.mxu0 0.0
    %193 = vmatpush1.msra.mxu0 0.0
    %194 = vmatprep.mubr.f32.mxu0 0.0
    %195 = vmatmul.mubr.f32.gmra.mrb[0].mxu0 %v106
    %v196 = vpop.f32.mrb[0].mxu0
    %v197 = vadd.f32 %v128, %v196
    %v198 = vpop.f32.mrb[0].mxu0
    %199 = vdwg.mxu0
    %v200 = vmax.f32 %v197, 0.0
    %v201 = vld [vmem:[#allocation7] sm:$0xff]
    %v202 = vld [vmem:[#allocation7 + $0x8] sm:$0xff]
    %v203 = vld [vmem:[#allocation7 + $0x10] sm:$0xff]
    %v204 = vld [vmem:[#allocation7 + $0x18] sm:$0xff]
    %v205 = vld [vmem:[#allocation7 + $0x20] sm:$0xff]
    %v206 = vld [vmem:[#allocation7 + $0x28] sm:$0xff]
    %v207 = vld [vmem:[#allocation7 + $0x30] sm:$0xff]
    %v208 = vld [vmem:[#allocation7 + $0x38] sm:$0xff]
    %v209 = vld [vmem:[#allocation7 + $0x40] sm:$0xff]
    %v210 = vld [vmem:[#allocation7 + $0x48] sm:$0xff]
    %v211 = vld [vmem:[#allocation7 + $0x50] sm:$0xff]
    %v212 = vld [vmem:[#allocation7 + $0x58] sm:$0xff]
    %v213 = vld [vmem:[#allocation7 + $0x60] sm:$0xff]
    %v214 = vld [vmem:[#allocation7 + $0x68] sm:$0xff]
    %v215 = vld [vmem:[#allocation7 + $0x70] sm:$0xff]
    %v216 = vld [vmem:[#allocation7 + $0x78] sm:$0xff]
    %v217 = vld [vmem:[#allocation7 + $0x80] sm:$0xff]
    %v218 = vld [vmem:[#allocation7 + $0x88] sm:$0xff]
    %v219 = vld [vmem:[#allocation7 + $0x90] sm:$0xff]
    %v220 = vld [vmem:[#allocation7 + $0x98] sm:$0xff]
    %v221 = vld [vmem:[#allocation7 + $0xa0] sm:$0xff]
    %v222 = vld [vmem:[#allocation7 + $0xa8] sm:$0xff]
    %v223 = vld [vmem:[#allocation7 + $0xb0] sm:$0xff]
    %v224 = vld [vmem:[#allocation7 + $0xb8] sm:$0xff]
    %v225 = vld [vmem:[#allocation7 + $0xc0] sm:$0xff]
    %v226 = vld [vmem:[#allocation7 + $0xc8] sm:$0xff]
    %v227 = vld [vmem:[#allocation7 + $0xd0] sm:$0xff]
    %v228 = vld [vmem:[#allocation7 + $0xd8] sm:$0xff]
    %v229 = vld [vmem:[#allocation7 + $0xe0] sm:$0xff]
    %v230 = vld [vmem:[#allocation7 + $0xe8] sm:$0xff]
    %v231 = vld [vmem:[#allocation7 + $0xf0] sm:$0xff]
    %v232 = vld [vmem:[#allocation7 + $0xf8] sm:$0xff]
    %v233 = vld [vmem:[%s4] sm:$0x3]
    %v235 = vlaneseq
    %v236 = vshrl.u32 %v235, 7
    %v237 = vsub.s32 0, %v236
    %v238 = vrot.slane %v233, %v237
    %v239 = vlaneseq
    %v240 = vshrl.u32 %v239, 7
    %v241 = vsub.s32 1, %v240
    %v242 = vrot.slane %v233, %v241
    %245 = vmatprep.subr.mxu0 %v202
    %246 = vmatpush1.msra.mxu0 %v201
    %247 = vmatprep.subr.mxu0 %v204
    %248 = vmatpush1.msra.mxu0 %v203
    %249 = vmatprep.subr.mxu0 %v206
    %250 = vmatpush1.msra.mxu0 %v205
    %251 = vmatprep.subr.mxu0 %v208
    %252 = vmatpush1.msra.mxu0 %v207
    %253 = vmatprep.subr.mxu0 %v210
    %254 = vmatpush1.msra.mxu0 %v209
    %255 = vmatprep.subr.mxu0 %v212
    %256 = vmatpush1.msra.mxu0 %v211
    %257 = vmatprep.subr.mxu0 %v214
    %258 = vmatpush1.msra.mxu0 %v213
    %259 = vmatprep.subr.mxu0 %v216
    %260 = vmatpush1.msra.mxu0 %v215
    %261 = vmatprep.subr.mxu0 %v218
    %262 = vmatpush1.msra.mxu0 %v217
    %263 = vmatprep.subr.mxu0 %v220
    %264 = vmatpush1.msra.mxu0 %v219
    %265 = vmatprep.subr.mxu0 %v222
    %266 = vmatpush1.msra.mxu0 %v221
    %267 = vmatprep.subr.mxu0 %v224
    %268 = vmatpush1.msra.mxu0 %v223
    %269 = vmatprep.subr.mxu0 %v226
    %270 = vmatpush1.msra.mxu0 %v225
    %271 = vmatprep.subr.mxu0 %v228
    %272 = vmatpush1.msra.mxu0 %v227
    %273 = vmatprep.subr.mxu0 %v230
    %274 = vmatpush1.msra.mxu0 %v229
    %275 = vmatprep.subr.mxu0 %v232
    %276 = vmatpush1.msra.mxu0 %v231
    %277 = vmatprep.subr.mxu0 0.0
    %278 = vmatpush1.msra.mxu0 0.0
    %279 = vmatprep.subr.mxu0 0.0
    %280 = vmatpush1.msra.mxu0 0.0
    %281 = vmatprep.subr.mxu0 0.0
    %282 = vmatpush1.msra.mxu0 0.0
    %283 = vmatprep.subr.mxu0 0.0
    %284 = vmatpush1.msra.mxu0 0.0
    %285 = vmatprep.subr.mxu0 0.0
    %286 = vmatpush1.msra.mxu0 0.0
    %287 = vmatprep.subr.mxu0 0.0
    %288 = vmatpush1.msra.mxu0 0.0
    %289 = vmatprep.subr.mxu0 0.0
    %290 = vmatpush1.msra.mxu0 0.0
    %291 = vmatprep.subr.mxu0 0.0
    %292 = vmatpush1.msra.mxu0 0.0
    %293 = vmatprep.subr.mxu0 0.0
    %294 = vmatpush1.msra.mxu0 0.0
    %295 = vmatprep.subr.mxu0 0.0
    %296 = vmatpush1.msra.mxu0 0.0
    %297 = vmatprep.subr.mxu0 0.0
    %298 = vmatpush1.msra.mxu0 0.0
    %299 = vmatprep.subr.mxu0 0.0
    %300 = vmatpush1.msra.mxu0 0.0
    %301 = vmatprep.subr.mxu0 0.0
    %302 = vmatpush1.msra.mxu0 0.0
    %303 = vmatprep.subr.mxu0 0.0
    %304 = vmatpush1.msra.mxu0 0.0
    %305 = vmatprep.subr.mxu0 0.0
    %306 = vmatpush1.msra.mxu0 0.0
    %307 = vmatprep.subr.mxu0 0.0
    %308 = vmatpush1.msra.mxu0 0.0
    %309 = vmatprep.mubr.f32.mxu0 0.0
    %310 = vmatmul.mubr.f32.gmra.mrb[0].mxu0 %v200
    %v311 = vpop.f32.mrb[0].mxu0
    %v312 = vadd.f32 %v238, %v311
    %v313 = vpop.f32.mrb[0].mxu0
    %v314 = vadd.f32 %v242, %v313
    %315 = vdwg.mxu0
    %316 = vst [vmem:[#allocation12] sm:$0xff] %v312
    %317 = vst [vmem:[#allocation14] sm:$0xff] %v314
    %v318 = vld [vmem:[%s5] sm:$0xff]
    %v319 = vmul.f32 %v314, 0.5
    %v320 = vmul.f32 %v319, 1.442695
    %v321 = vpow.pop %v320
    %v322 = vmul.f32 %v318, %v321
    %v323 = vadd.f32 %v312, %v322
    %v324 = vld [vmem:[#allocation8] sm:$0xff]
    %v325 = vld [vmem:[#allocation8 + $0x8] sm:$0xff]
    %v326 = vld [vmem:[#allocation8 + $0x10] sm:$0xff]
    %v327 = vld [vmem:[#allocation8 + $0x18] sm:$0xff]
    %v328 = vld [vmem:[#allocation8 + $0x20] sm:$0xff]
    %v329 = vld [vmem:[#allocation8 + $0x28] sm:$0xff]
    %v330 = vld [vmem:[#allocation8 + $0x30] sm:$0xff]
    %v331 = vld [vmem:[#allocation8 + $0x38] sm:$0xff]
    %v332 = vld [vmem:[#allocation8 + $0x40] sm:$0xff]
    %v333 = vld [vmem:[#allocation8 + $0x48] sm:$0xff]
    %v334 = vld [vmem:[#allocation8 + $0x50] sm:$0xff]
    %v335 = vld [vmem:[#allocation8 + $0x58] sm:$0xff]
    %v336 = vld [vmem:[#allocation8 + $0x60] sm:$0xff]
    %v337 = vld [vmem:[#allocation8 + $0x68] sm:$0xff]
    %v338 = vld [vmem:[#allocation8 + $0x70] sm:$0xff]
    %v339 = vld [vmem:[#allocation8 + $0x78] sm:$0xff]
    %v340 = vld [vmem:[%s7] sm:$0x1]
    %v342 = vlaneseq
    %v343 = vshrl.u32 %v342, 7
    %v344 = vsub.s32 0, %v343
    %v345 = vrot.slane %v340, %v344
    %347 = vmatprep.subr.mxu0 0.0
    %348 = vmatpush1.msra.mxu0 %v324
    %349 = vmatprep.subr.mxu0 0.0
    %350 = vmatpush1.msra.mxu0 %v325
    %351 = vmatprep.subr.mxu0 0.0
    %352 = vmatpush1.msra.mxu0 %v326
    %353 = vmatprep.subr.mxu0 0.0
    %354 = vmatpush1.msra.mxu0 %v327
    %355 = vmatprep.subr.mxu0 0.0
    %356 = vmatpush1.msra.mxu0 %v328
    %357 = vmatprep.subr.mxu0 0.0
    %358 = vmatpush1.msra.mxu0 %v329
    %359 = vmatprep.subr.mxu0 0.0
    %360 = vmatpush1.msra.mxu0 %v330
    %361 = vmatprep.subr.mxu0 0.0
    %362 = vmatpush1.msra.mxu0 %v331
    %363 = vmatprep.subr.mxu0 0.0
    %364 = vmatpush1.msra.mxu0 %v332
    %365 = vmatprep.subr.mxu0 0.0
    %366 = vmatpush1.msra.mxu0 %v333
    %367 = vmatprep.subr.mxu0 0.0
    %368 = vmatpush1.msra.mxu0 %v334
    %369 = vmatprep.subr.mxu0 0.0
    %370 = vmatpush1.msra.mxu0 %v335
    %371 = vmatprep.subr.mxu0 0.0
    %372 = vmatpush1.msra.mxu0 %v336
    %373 = vmatprep.subr.mxu0 0.0
    %374 = vmatpush1.msra.mxu0 %v337
    %375 = vmatprep.subr.mxu0 0.0
    %376 = vmatpush1.msra.mxu0 %v338
    %377 = vmatprep.subr.mxu0 0.0
    %378 = vmatpush1.msra.mxu0 %v339
    %379 = vmatprep.subr.mxu0 0.0
    %380 = vmatpush1.msra.mxu0 0.0
    %381 = vmatprep.subr.mxu0 0.0
    %382 = vmatpush1.msra.mxu0 0.0
    %383 = vmatprep.subr.mxu0 0.0
    %384 = vmatpush1.msra.mxu0 0.0
    %385 = vmatprep.subr.mxu0 0.0
    %386 = vmatpush1.msra.mxu0 0.0
    %387 = vmatprep.subr.mxu0 0.0
    %388 = vmatpush1.msra.mxu0 0.0
    %389 = vmatprep.subr.mxu0 0.0
    %390 = vmatpush1.msra.mxu0 0.0
    %391 = vmatprep.subr.mxu0 0.0
    %392 = vmatpush1.msra.mxu0 0.0
    %393 = vmatprep.subr.mxu0 0.0
    %394 = vmatpush1.msra.mxu0 0.0
    %395 = vmatprep.subr.mxu0 0.0
    %396 = vmatpush1.msra.mxu0 0.0
    %397 = vmatprep.subr.mxu0 0.0
    %398 = vmatpush1.msra.mxu0 0.0
    %399 = vmatprep.subr.mxu0 0.0
    %400 = vmatpush1.msra.mxu0 0.0
    %401 = vmatprep.subr.mxu0 0.0
    %402 = vmatpush1.msra.mxu0 0.0
    %403 = vmatprep.subr.mxu0 0.0
    %404 = vmatpush1.msra.mxu0 0.0
    %405 = vmatprep.subr.mxu0 0.0
    %406 = vmatpush1.msra.mxu0 0.0
    %407 = vmatprep.subr.mxu0 0.0
    %408 = vmatpush1.msra.mxu0 0.0
    %409 = vmatprep.subr.mxu0 0.0
    %410 = vmatpush1.msra.mxu0 0.0
    %411 = vmatprep.mubr.f32.mxu0 0.0
    %412 = vmatmul.mubr.f32.gmra.mrb[0].mxu0 %v323
    %v413 = vpop.f32.mrb[0].mxu0
    %v414 = vadd.f32 %v345, %v413
    %v415 = vpop.f32.mrb[0].mxu0
    %416 = vdwg.mxu0
    %v417 = vmax.f32 %v414, 0.0
    %v418 = vld [vmem:[#allocation10] sm:$0xff]
    %v419 = vld [vmem:[#allocation10 + $0x8] sm:$0xff]
    %v420 = vld [vmem:[#allocation10 + $0x10] sm:$0xff]
    %v421 = vld [vmem:[#allocation10 + $0x18] sm:$0xff]
    %v422 = vld [vmem:[#allocation10 + $0x20] sm:$0xff]
    %v423 = vld [vmem:[#allocation10 + $0x28] sm:$0xff]
    %v424 = vld [vmem:[#allocation10 + $0x30] sm:$0xff]
    %v425 = vld [vmem:[#allocation10 + $0x38] sm:$0xff]
    %v426 = vld [vmem:[#allocation10 + $0x40] sm:$0xff]
    %v427 = vld [vmem:[#allocation10 + $0x48] sm:$0xff]
    %v428 = vld [vmem:[#allocation10 + $0x50] sm:$0xff]
    %v429 = vld [vmem:[#allocation10 + $0x58] sm:$0xff]
    %v430 = vld [vmem:[#allocation10 + $0x60] sm:$0xff]
    %v431 = vld [vmem:[#allocation10 + $0x68] sm:$0xff]
    %v432 = vld [vmem:[#allocation10 + $0x70] sm:$0xff]
    %v433 = vld [vmem:[#allocation10 + $0x78] sm:$0xff]
    %v434 = vld [vmem:[%s9] sm:$0x1]
    %v436 = vlaneseq
    %v437 = vshrl.u32 %v436, 7
    %v438 = vsub.s32 0, %v437
    %v439 = vrot.slane %v434, %v438
    %441 = vmatprep.subr.mxu0 0.0
    %442 = vmatpush1.msra.mxu0 %v418
    %443 = vmatprep.subr.mxu0 0.0
    %444 = vmatpush1.msra.mxu0 %v419
    %445 = vmatprep.subr.mxu0 0.0
    %446 = vmatpush1.msra.mxu0 %v420
    %447 = vmatprep.subr.mxu0 0.0
    %448 = vmatpush1.msra.mxu0 %v421
    %449 = vmatprep.subr.mxu0 0.0
    %450 = vmatpush1.msra.mxu0 %v422
    %451 = vmatprep.subr.mxu0 0.0
    %452 = vmatpush1.msra.mxu0 %v423
    %453 = vmatprep.subr.mxu0 0.0
    %454 = vmatpush1.msra.mxu0 %v424
    %455 = vmatprep.subr.mxu0 0.0
    %456 = vmatpush1.msra.mxu0 %v425
    %457 = vmatprep.subr.mxu0 0.0
    %458 = vmatpush1.msra.mxu0 %v426
    %459 = vmatprep.subr.mxu0 0.0
    %460 = vmatpush1.msra.mxu0 %v427
    %461 = vmatprep.subr.mxu0 0.0
    %462 = vmatpush1.msra.mxu0 %v428
    %463 = vmatprep.subr.mxu0 0.0
    %464 = vmatpush1.msra.mxu0 %v429
    %465 = vmatprep.subr.mxu0 0.0
    %466 = vmatpush1.msra.mxu0 %v430
    %467 = vmatprep.subr.mxu0 0.0
    %468 = vmatpush1.msra.mxu0 %v431
    %469 = vmatprep.subr.mxu0 0.0
    %470 = vmatpush1.msra.mxu0 %v432
    %471 = vmatprep.subr.mxu0 0.0
    %472 = vmatpush1.msra.mxu0 %v433
    %473 = vmatprep.subr.mxu0 0.0
    %474 = vmatpush1.msra.mxu0 0.0
    %475 = vmatprep.subr.mxu0 0.0
    %476 = vmatpush1.msra.mxu0 0.0
    %477 = vmatprep.subr.mxu0 0.0
    %478 = vmatpush1.msra.mxu0 0.0
    %479 = vmatprep.subr.mxu0 0.0
    %480 = vmatpush1.msra.mxu0 0.0
    %481 = vmatprep.subr.mxu0 0.0
    %482 = vmatpush1.msra.mxu0 0.0
    %483 = vmatprep.subr.mxu0 0.0
    %484 = vmatpush1.msra.mxu0 0.0
    %485 = vmatprep.subr.mxu0 0.0
    %486 = vmatpush1.msra.mxu0 0.0
    %487 = vmatprep.subr.mxu0 0.0
    %488 = vmatpush1.msra.mxu0 0.0
    %489 = vmatprep.subr.mxu0 0.0
    %490 = vmatpush1.msra.mxu0 0.0
    %491 = vmatprep.subr.mxu0 0.0
    %492 = vmatpush1.msra.mxu0 0.0
    %493 = vmatprep.subr.mxu0 0.0
    %494 = vmatpush1.msra.mxu0 0.0
    %495 = vmatprep.subr.mxu0 0.0
    %496 = vmatpush1.msra.mxu0 0.0
    %497 = vmatprep.subr.mxu0 0.0
    %498 = vmatpush1.msra.mxu0 0.0
    %499 = vmatprep.subr.mxu0 0.0
    %500 = vmatpush1.msra.mxu0 0.0
    %501 = vmatprep.subr.mxu0 0.0
    %502 = vmatpush1.msra.mxu0 0.0
    %503 = vmatprep.subr.mxu0 0.0
    %504 = vmatpush1.msra.mxu0 0.0
    %505 = vmatprep.mubr.f32.mxu0 0.0
    %506 = vmatmul.mubr.f32.gmra.mrb[0].mxu0 %v417
    %v507 = vpop.f32.mrb[0].mxu0
    %v508 = vadd.f32 %v439, %v507
    %v509 = vpop.f32.mrb[0].mxu0
    %510 = vdwg.mxu0
    %511 = vst [vmem:[#allocation11] sm:$0xff] %v508
    // Predicated region
    $region62: #{tpu_custom_call.1} parent=1 // pred_check
      _
    $region63: #{tpu_custom_call.1} parent=1 // pred_check_branch
      %513 = sbr.rel (0) target = $region65
    $region64: #{tpu_custom_call.1} parent=1 // pred_region
      %s515 = ssub.s32 128, 128
      %516 = vsyncadd [#allocation4], %s515
      %s518 = sshll.u32 [#allocation11], 4
      %s519 = int_to_ptr.vmem [resolvable:$true] %s518
      %521 = dma.vmem_to_hbm [thread:$0]  %s519, 128, %s10, [#allocation4]
    $region65: #{tpu_custom_call.1} parent=1 // pred_fallthru
      _
    // Predicated region
    $region66: #{tpu_custom_call.1} parent=1 // pred_check
      _
    $region67: #{tpu_custom_call.1} parent=1 // pred_check_branch
      %523 = sbr.rel (0) target = $region69
    $region68: #{tpu_custom_call.1} parent=1 // pred_region
      %s525 = ssub.s32 128, 128
      %526 = vsyncadd [#allocation13], %s525
      %s528 = sshll.u32 [#allocation12], 4
      %s529 = int_to_ptr.vmem [resolvable:$true] %s528
      %531 = dma.vmem_to_hbm [thread:$0]  %s529, 128, %s11, [#allocation13]
    $region69: #{tpu_custom_call.1} parent=1 // pred_fallthru
      _
    // Predicated region
    $region70: #{tpu_custom_call.1} parent=1 // pred_check
      _
    $region71: #{tpu_custom_call.1} parent=1 // pred_check_branch
      %533 = sbr.rel (0) target = $region73
    $region72: #{tpu_custom_call.1} parent=1 // pred_region
      %s535 = ssub.s32 128, 128
      %536 = vsyncadd [#allocation13], %s535
      %s538 = sshll.u32 [#allocation14], 4
      %s539 = int_to_ptr.vmem [resolvable:$true] %s538
      %541 = dma.vmem_to_hbm [thread:$0]  %s539, 128, %s12, [#allocation13]
    $region73: #{tpu_custom_call.1} parent=1 // pred_fallthru
      _
    // Predicated region
    $region74: #{tpu_custom_call.1} parent=1 // pred_check
      _
    $region75: #{tpu_custom_call.1} parent=1 // pred_check_branch
      %543 = sbr.rel (0) target = $region77
    $region76: #{tpu_custom_call.1} parent=1 // pred_region
      %544 = dma.done [#allocation4], 128
    $region77: #{tpu_custom_call.1} parent=1 // pred_fallthru
      _
    // Predicated region
    $region78: #{tpu_custom_call.1} parent=1 // pred_check
      _
    $region79: #{tpu_custom_call.1} parent=1 // pred_check_branch
      %546 = sbr.rel (0) target = $region81
    $region80: #{tpu_custom_call.1} parent=1 // pred_region
      %547 = dma.done [#allocation13], 128
    $region81: #{tpu_custom_call.1} parent=1 // pred_fallthru
      _
    // Predicated region
    $region82: #{tpu_custom_call.1} parent=1 // pred_check
      _
    $region83: #{tpu_custom_call.1} parent=1 // pred_check_branch
      %549 = sbr.rel (0) target = $region85
    $region84: #{tpu_custom_call.1} parent=1 // pred_region
      %550 = dma.done [#allocation13], 128
    $region85: #{tpu_custom_call.1} parent=1 // pred_fallthru
      _
    %551 = vsyncpa [#allocation3], 1
    %552 = vsyncpa [#allocation6], 1
    %553 = vsyncpa [#allocation9], 1
    %554 = vsyncpa [#allocation4], 1
    %555 = vsyncpa [#allocation13], 1

</llo_original>
